<compile_context>
chip_gen: v6e
topology: v6e:2x2x1
jax: 0.10.0
libtpu: 0.0.40
codegen_flags: <defaults>
</compile_context>

<pallas_src>
import functools

import jax
import jax.numpy as jnp
from jax.experimental import pallas as pl
from jax.experimental.pallas import tpu as pltpu


def _round_up(n: int, m: int) -> int:
    return (n + m - 1) // m * m


def mlp_kernel(x_ref, w1_ref, b1_ref, w2_ref, b2_ref, w3_ref, b3_ref, o_ref):
    # fc1 -> relu -> (dropout=identity) -> fc2 -> relu -> (dropout=identity) -> fc3
    # bf16 MXU inputs, f32 accumulation (preferred_element_type), f32 bias/ReLU.
    x = x_ref[...].astype(jnp.bfloat16)
    h1 = jnp.dot(x, w1_ref[...], preferred_element_type=jnp.float32) + b1_ref[...]
    h1 = jnp.maximum(h1, 0.0)                                   # ReLU
    h2 = jnp.dot(h1.astype(jnp.bfloat16), w2_ref[...],
                 preferred_element_type=jnp.float32) + b2_ref[...]
    h2 = jnp.maximum(h2, 0.0)                                   # ReLU
    out = jnp.dot(h2.astype(jnp.bfloat16), w3_ref[...],
                  preferred_element_type=jnp.float32) + b3_ref[...]
    o_ref[...] = out.astype(o_ref.dtype)


@functools.partial(jax.jit, static_argnames=("block_b",))
def neural_network_forward(x, params, *, block_b: int = 256):
    """x: (B, input_size) f32. params: dict of transposed (in, out) weights + (1, out) biases.

    block_b: target batch tile. Keep <= ~1024-2048 on v7x (64 MiB VMEM) for
    wide inputs; v5e/v6e tolerate larger tiles.
    """
    w1, b1 = params["w1"], params["b1"]
    w2, b2 = params["w2"], params["b2"]
    w3, b3 = params["w3"], params["b3"]

    B, in_size = x.shape
    hidden = w1.shape[1]
    out_size = w3.shape[1]

    # --- batch tiling: grid over batch, tile a multiple of 8 sublanes ---
    TB = min(block_b, _round_up(B, 8))
    Bp = _round_up(B, TB)
    if Bp != B:
        x = jnp.pad(x, ((0, Bp - B), (0, 0)))

    # --- lane-dense output: pad out features to a multiple of 128 ---
    out_pad = _round_up(out_size, 128)
    w3p = jnp.pad(w3, ((0, 0), (0, out_pad - out_size)))
    b3p = jnp.pad(b3, ((0, 0), (0, out_pad - out_size)))

    # --- bf16 weights for the MXU (accumulation stays f32 in-kernel) ---
    w1b = w1.astype(jnp.bfloat16)
    w2b = w2.astype(jnp.bfloat16)
    w3b = w3p.astype(jnp.bfloat16)

    grid = (Bp // TB,)

    # Weights/biases: constant index_map -> loaded once, resident across steps.
    const = lambda i: (0, 0)
    in_specs = [
        pl.BlockSpec((TB, in_size), lambda i: (i, 0)),        # x tile (pipelined)
        pl.BlockSpec((in_size, hidden), const),               # w1
        pl.BlockSpec((1, hidden), const),                     # b1
        pl.BlockSpec((hidden, hidden), const),                # w2
        pl.BlockSpec((1, hidden), const),                     # b2
        pl.BlockSpec((hidden, out_pad), const),               # w3 (padded)
        pl.BlockSpec((1, out_pad), const),                    # b3 (padded)
    ]
    out_spec = pl.BlockSpec((TB, out_pad), lambda i: (i, 0))

    flops = 2 * Bp * (in_size * hidden + hidden * hidden + hidden * out_pad)
    bytes_accessed = (
        Bp * in_size * 4                      # x (f32 in HBM)
        + (w1b.size + w2b.size + w3b.size) * 2  # bf16 weights
        + (b1.size + b2.size + b3p.size) * 4    # f32 biases
        + Bp * out_pad * 4                    # output
    )

    out_padded = pl.pallas_call(
        mlp_kernel,
        out_shape=jax.ShapeDtypeStruct((Bp, out_pad), jnp.float32),
        grid=grid,
        in_specs=in_specs,
        out_specs=out_spec,
        compiler_params=pltpu.CompilerParams(
            dimension_semantics=("parallel",),   # megacore sharding on v7x
        ),
        cost_estimate=pl.CostEstimate(
            flops=flops, bytes_accessed=bytes_accessed, transcendentals=0
        ),
    )(x, w1b, b1, w2b, b2, w3b, b3p)

    return out_padded[:B, :out_size]


def init_params(key, input_size, hidden_size, output_size):
    """Deterministic init mirroring the PyTorch module:
    fc1/fc2 weights: kaiming_normal_ (std = sqrt(2 / fan_in));
    fc3 weight + all biases: PyTorch default uniform(-1/sqrt(fan_in), 1/sqrt(fan_in)).
    Weights are stored transposed (in, out)."""
    k1, k2, k3, kb1, kb2, kb3 = jax.random.split(key, 6)

    def kaiming(k, fan_in, fan_out):
        std = (2.0 / fan_in) ** 0.5
        return jax.random.normal(k, (fan_in, fan_out), jnp.float32) * std

    def default_uniform(k, fan_in, shape):
        bound = 1.0 / (fan_in ** 0.5)
        return jax.random.uniform(k, shape, jnp.float32, -bound, bound)

    return {
        "w1": kaiming(k1, input_size, hidden_size),
        "b1": default_uniform(kb1, input_size, (1, hidden_size)),
        "w2": kaiming(k2, hidden_size, hidden_size),
        "b2": default_uniform(kb2, hidden_size, (1, hidden_size)),
        "w3": default_uniform(k3, hidden_size, (hidden_size, output_size)),
        "b3": default_uniform(kb3, hidden_size, (1, output_size)),
    }


def reference_forward(x, p):
    """Reference mirroring the kernel's bf16-weight / f32-accumulate math."""
    bf16 = jnp.bfloat16
    f32 = jnp.float32
    h1 = jnp.dot(x.astype(bf16), p["w1"].astype(bf16),
                 preferred_element_type=f32) + p["b1"]
    h1 = jnp.maximum(h1, 0.0)
    h2 = jnp.dot(h1.astype(bf16), p["w2"].astype(bf16),
                 preferred_element_type=f32) + p["b2"]
    h2 = jnp.maximum(h2, 0.0)
    return jnp.dot(h2.astype(bf16), p["w3"].astype(bf16),
                   preferred_element_type=f32) + p["b3"]


if __name__ == "__main__":
    # Small shapes consistent with the MLP: input=64, hidden=32, output=16.
    # batch=40 with block_b=32 exercises the batch grid (2 tiles) + padding.
    batch, input_size, hidden_size, output_size = 40, 64, 32, 16

    key = jax.random.PRNGKey(0)
    kx, kp = jax.random.split(key)
    x = jax.random.normal(kx, (batch, input_size), jnp.float32)
    params = init_params(kp, input_size, hidden_size, output_size)

    out = neural_network_forward(x, params, block_b=32)
    out = jax.block_until_ready(out)

    ref = reference_forward(x, params)
    assert out.shape == (batch, output_size), out.shape
    assert jnp.allclose(out, ref, atol=2e-3, rtol=2e-3), (
        float(jnp.max(jnp.abs(out - ref))))

    print("KERNEL_OK")
</pallas_src>

<mosaic_0001>
module attributes {stable_mosaic.version = 11 : i64} {
  func.func @mlp_kernel(%arg0: i32, %arg1: memref<32x64xf32, #tpu.memory_space<vmem>>, %arg2: memref<64x32xbf16, #tpu.memory_space<vmem>>, %arg3: memref<1x32xf32, #tpu.memory_space<vmem>>, %arg4: memref<32x32xbf16, #tpu.memory_space<vmem>>, %arg5: memref<1x32xf32, #tpu.memory_space<vmem>>, %arg6: memref<32x128xbf16, #tpu.memory_space<vmem>>, %arg7: memref<1x128xf32, #tpu.memory_space<vmem>>, %arg8: memref<32x128xf32, #tpu.memory_space<vmem>>) attributes {dimension_semantics = [#tpu.dimension_semantics<parallel>], iteration_bounds = array<i64: 2>, scalar_prefetch = 0 : i64, scratch_operands = 0 : i64, tpu.core_type = #tpu.core_type<tc>, window_params = [{transform_indices = @transform_0, window_bounds = array<i64: 32, 64>}, {pipeline_mode = #tpu.pipeline_mode<synchronous>, transform_indices = @transform_1, window_bounds = array<i64: 64, 32>}, {pipeline_mode = #tpu.pipeline_mode<synchronous>, transform_indices = @transform_2, window_bounds = array<i64: 1, 32>}, {pipeline_mode = #tpu.pipeline_mode<synchronous>, transform_indices = @transform_3, window_bounds = array<i64: 32, 32>}, {pipeline_mode = #tpu.pipeline_mode<synchronous>, transform_indices = @transform_4, window_bounds = array<i64: 1, 32>}, {pipeline_mode = #tpu.pipeline_mode<synchronous>, transform_indices = @transform_5, window_bounds = array<i64: 32, 128>}, {pipeline_mode = #tpu.pipeline_mode<synchronous>, transform_indices = @transform_6, window_bounds = array<i64: 1, 128>}, {transform_indices = @transform_7, window_bounds = array<i64: 32, 128>}]} {
    %c0 = arith.constant 0 : index
    %c0_0 = arith.constant 0 : index
    %0 = vector.load %arg1[%c0, %c0_0] : memref<32x64xf32, #tpu.memory_space<vmem>>, vector<32x64xf32>
    %1 = arith.truncf %0 : vector<32x64xf32> to vector<32x64xbf16>
    %c0_1 = arith.constant 0 : index
    %c0_2 = arith.constant 0 : index
    %2 = vector.load %arg2[%c0_1, %c0_2] : memref<64x32xbf16, #tpu.memory_space<vmem>>, vector<64x32xbf16>
    %cst = arith.constant dense<0.000000e+00> : vector<32x32xf32>
    %3 = tpu.matmul %1, %2, %cst {dimension_numbers = #tpu.dot_dimension_numbers<[1], [0], [0], [1], [0, 0, 1, 1], [], []>} : vector<32x64xbf16>, vector<64x32xbf16>, vector<32x32xf32> -> vector<32x32xf32>
    %c0_3 = arith.constant 0 : index
    %c0_4 = arith.constant 0 : index
    %4 = vector.load %arg3[%c0_3, %c0_4] : memref<1x32xf32, #tpu.memory_space<vmem>>, vector<1x32xf32>
    %5 = vector.broadcast %4 : vector<1x32xf32> to vector<32x32xf32>
    %6 = arith.addf %3, %5 : vector<32x32xf32>
    %cst_5 = arith.constant 0.000000e+00 : f32
    %7 = vector.broadcast %cst_5 : f32 to vector<32x32xf32>
    %8 = arith.maximumf %6, %7 : vector<32x32xf32>
    %9 = arith.truncf %8 : vector<32x32xf32> to vector<32x32xbf16>
    %c0_6 = arith.constant 0 : index
    %c0_7 = arith.constant 0 : index
    %10 = vector.load %arg4[%c0_6, %c0_7] : memref<32x32xbf16, #tpu.memory_space<vmem>>, vector<32x32xbf16>
    %cst_8 = arith.constant dense<0.000000e+00> : vector<32x32xf32>
    %11 = tpu.matmul %9, %10, %cst_8 {dimension_numbers = #tpu.dot_dimension_numbers<[1], [0], [0], [1], [0, 0, 1, 1], [], []>} : vector<32x32xbf16>, vector<32x32xbf16>, vector<32x32xf32> -> vector<32x32xf32>
    %c0_9 = arith.constant 0 : index
    %c0_10 = arith.constant 0 : index
    %12 = vector.load %arg5[%c0_9, %c0_10] : memref<1x32xf32, #tpu.memory_space<vmem>>, vector<1x32xf32>
    %13 = vector.broadcast %12 : vector<1x32xf32> to vector<32x32xf32>
    %14 = arith.addf %11, %13 : vector<32x32xf32>
    %cst_11 = arith.constant 0.000000e+00 : f32
    %15 = vector.broadcast %cst_11 : f32 to vector<32x32xf32>
    %16 = arith.maximumf %14, %15 : vector<32x32xf32>
    %17 = arith.truncf %16 : vector<32x32xf32> to vector<32x32xbf16>
    %c0_12 = arith.constant 0 : index
    %c0_13 = arith.constant 0 : index
    %18 = vector.load %arg6[%c0_12, %c0_13] : memref<32x128xbf16, #tpu.memory_space<vmem>>, vector<32x128xbf16>
    %cst_14 = arith.constant dense<0.000000e+00> : vector<32x128xf32>
    %19 = tpu.matmul %17, %18, %cst_14 {dimension_numbers = #tpu.dot_dimension_numbers<[1], [0], [0], [1], [0, 0, 1, 1], [], []>} : vector<32x32xbf16>, vector<32x128xbf16>, vector<32x128xf32> -> vector<32x128xf32>
    %c0_15 = arith.constant 0 : index
    %c0_16 = arith.constant 0 : index
    %20 = vector.load %arg7[%c0_15, %c0_16] : memref<1x128xf32, #tpu.memory_space<vmem>>, vector<1x128xf32>
    %21 = vector.broadcast %20 : vector<1x128xf32> to vector<32x128xf32>
    %22 = arith.addf %19, %21 : vector<32x128xf32>
    %c0_17 = arith.constant 0 : index
    %c0_18 = arith.constant 0 : index
    %23 = vector.load %arg8[%c0_17, %c0_18] : memref<32x128xf32, #tpu.memory_space<vmem>>, vector<32x128xf32>
    tpu.vector_store %arg8[%c0_17, %c0_18], %22 {strides = array<i32>} : memref<32x128xf32, #tpu.memory_space<vmem>>, vector<32x128xf32>,
    return
  }
  func.func @transform_0(%arg0: i32) -> (i32, i32) {
    %c0_i32 = arith.constant 0 : i32
    %c0_i32_0 = arith.constant 0 : i32
    return %arg0, %c0_i32 : i32, i32
  }
  func.func @transform_1(%arg0: i32) -> (i32, i32) {
    %c0_i32 = arith.constant 0 : i32
    %c0_i32_0 = arith.constant 0 : i32
    %c0_i32_1 = arith.constant 0 : i32
    return %c0_i32, %c0_i32_0 : i32, i32
  }
  func.func @transform_2(%arg0: i32) -> (i32, i32) {
    %c0_i32 = arith.constant 0 : i32
    %c0_i32_0 = arith.constant 0 : i32
    %c0_i32_1 = arith.constant 0 : i32
    return %c0_i32, %c0_i32_0 : i32, i32
  }
  func.func @transform_3(%arg0: i32) -> (i32, i32) {
    %c0_i32 = arith.constant 0 : i32
    %c0_i32_0 = arith.constant 0 : i32
    %c0_i32_1 = arith.constant 0 : i32
    return %c0_i32, %c0_i32_0 : i32, i32
  }
  func.func @transform_4(%arg0: i32) -> (i32, i32) {
    %c0_i32 = arith.constant 0 : i32
    %c0_i32_0 = arith.constant 0 : i32
    %c0_i32_1 = arith.constant 0 : i32
    return %c0_i32, %c0_i32_0 : i32, i32
  }
  func.func @transform_5(%arg0: i32) -> (i32, i32) {
    %c0_i32 = arith.constant 0 : i32
    %c0_i32_0 = arith.constant 0 : i32
    %c0_i32_1 = arith.constant 0 : i32
    return %c0_i32, %c0_i32_0 : i32, i32
  }
  func.func @transform_6(%arg0: i32) -> (i32, i32) {
    %c0_i32 = arith.constant 0 : i32
    %c0_i32_0 = arith.constant 0 : i32
    %c0_i32_1 = arith.constant 0 : i32
    return %c0_i32, %c0_i32_0 : i32, i32
  }
  func.func @transform_7(%arg0: i32) -> (i32, i32) {
    %c0_i32 = arith.constant 0 : i32
    %c0_i32_0 = arith.constant 0 : i32
    return %arg0, %c0_i32 : i32, i32
  }
}

</mosaic_0001>

<llo_original>
// kernel: neural_network_forward.1
$region0: #{neural_network_forward.1}
  #allocation0 [shape = 'u32[]', space=smem, size = 0x4, offset = 0x4, fixed_abs, tag = 'smem constant byte address 0x4 - core index']
  #allocation1 [shape = 'u32[144,128]{1,0:T(1,128)}', space=vmem, size = 0x12000, scoped, tag = 'internal scratch']
  %s0 = inlined_call_operand.vmem [shape: f32[64,64], index: 0, kind: input, shape index: {}]
  %s1 = inlined_call_operand.vmem [shape: bf16[64,32], index: 1, kind: input, shape index: {}]
  %s2 = inlined_call_operand.vmem [shape: f32[1,32], index: 2, kind: input, shape index: {}]
  %s3 = inlined_call_operand.vmem [shape: bf16[32,32], index: 3, kind: input, shape index: {}]
  %s4 = inlined_call_operand.vmem [shape: f32[1,32], index: 4, kind: input, shape index: {}]
  %s5 = inlined_call_operand.vmem [shape: bf16[32,128], index: 5, kind: input, shape index: {}]
  %s6 = inlined_call_operand.vmem [shape: f32[1,128], index: 6, kind: input, shape index: {}]
  %s7 = inlined_call_operand.vmem [shape: f32[64,128], index: 7, kind: output, shape index: {}]
  %s8 = sld [smem:[#allocation0]]
  $region61: #{neural_network_forward.1} parent=0
    _
  %s10 = ssub.s32 1, %s8
  %s11 = scalar_select 0, %s10, %s8
  loop: start=0, step=1, limit=4
  $region2: #{neural_network_forward.1} parent=0 // loop_pre_header
    _
  $region3: #{neural_network_forward.1} parent=0 // loop_header
    %s13 = sphi 0, %s17
    %p14 = scmp.ge.s32.totalorder %s13, 4
    %s23 = sphi 0, %s25
    %s26 = sphi 0, %s23
    %s27 = sphi 0, %s26
    %s43 = sphi 0, %s27
    %s47 = sphi 0, %s47
    %s49 = sphi 0, %s47
    %s50 = sphi 0, %s49
    %s64 = sphi 0, %s50
    %s68 = sphi 0, %s68
    %s70 = sphi 0, %s68
    %s71 = sphi 0, %s70
    %s85 = sphi 0, %s71
    %s89 = sphi 0, %s89
    %s91 = sphi 0, %s89
    %s92 = sphi 0, %s91
    %s106 = sphi 0, %s92
    %s110 = sphi 0, %s110
    %s112 = sphi 0, %s110
    %s113 = sphi 0, %s112
    %s127 = sphi 0, %s113
    %s131 = sphi 0, %s131
    %s133 = sphi 0, %s131
    %s134 = sphi 0, %s133
    %s148 = sphi 0, %s134
    %s152 = sphi 0, %s152
    %s154 = sphi 0, %s152
    %s155 = sphi 0, %s154
    %s169 = sphi 0, %s155
    %s175 = sphi 0, %s177
    %s178 = sphi 0, %s175
    %s179 = sphi 0, %s178
    %s195 = sphi 0, %s179
  $region4: #{neural_network_forward.1} parent=0 // loop_header_branch
    %16 = sbr.rel (%p14) target = $region8
  $region5: #{neural_network_forward.1} parent=0 // loop_body
    %s18 = ssub.s32 %s13, 1
    %s19 = ssub.s32 %s13, 2
    %s20 = sadd.s32 %s13, 1
    %s21 = ssub.s32 %s13, %s20
    %p22 = scmp.eq.s32.totalorder %s21, 0
    %s24 = sadd.s32 %s23, 1
    %s25 = scalar_select %p22, %s23, %s24
    %p28 = pneg %p22
    %p29 = scmp.eq.s32.totalorder %s13, 1
    %p30 = por %p28, %p29
    %p31 = scmp.ne.s32.totalorder %s23, %s26
    %p32 = scmp.eq.s32.totalorder %s13, 0
    %p33 = por %p31, %p32
    %p34 = scmp.ne.s32.totalorder %s23, %s26
    %p35 = scmp.eq.s32.totalorder %s18, 1
    %p36 = por %p34, %p35
    %p37 = scmp.ne.s32.totalorder %s26, %s27
    %p38 = scmp.eq.s32.totalorder %s18, 0
    %p39 = por %p37, %p38
    %p40 = scmp.ne.s32.totalorder %s26, %s27
    %p41 = scmp.eq.s32.totalorder %s19, 1
    %p42 = por %p40, %p41
    %p44 = scmp.ne.s32.totalorder %s27, %s43
    %p45 = scmp.eq.s32.totalorder %s19, 0
    %p46 = por %p44, %p45
    %s48 = sadd.s32 %s47, 1
    %p51 = scmp.eq.s32.totalorder %s13, 1
    %p52 = scmp.ne.s32.totalorder %s47, %s49
    %p53 = scmp.eq.s32.totalorder %s13, 0
    %p54 = por %p52, %p53
    %p55 = scmp.ne.s32.totalorder %s47, %s49
    %p56 = scmp.eq.s32.totalorder %s18, 1
    %p57 = por %p55, %p56
    %p58 = scmp.ne.s32.totalorder %s49, %s50
    %p59 = scmp.eq.s32.totalorder %s18, 0
    %p60 = por %p58, %p59
    %p61 = scmp.ne.s32.totalorder %s49, %s50
    %p62 = scmp.eq.s32.totalorder %s19, 1
    %p63 = por %p61, %p62
    %p65 = scmp.ne.s32.totalorder %s50, %s64
    %p66 = scmp.eq.s32.totalorder %s19, 0
    %p67 = por %p65, %p66
    %s69 = sadd.s32 %s68, 1
    %p72 = scmp.eq.s32.totalorder %s13, 1
    %p73 = scmp.ne.s32.totalorder %s68, %s70
    %p74 = scmp.eq.s32.totalorder %s13, 0
    %p75 = por %p73, %p74
    %p76 = scmp.ne.s32.totalorder %s68, %s70
    %p77 = scmp.eq.s32.totalorder %s18, 1
    %p78 = por %p76, %p77
    %p79 = scmp.ne.s32.totalorder %s70, %s71
    %p80 = scmp.eq.s32.totalorder %s18, 0
    %p81 = por %p79, %p80
    %p82 = scmp.ne.s32.totalorder %s70, %s71
    %p83 = scmp.eq.s32.totalorder %s19, 1
    %p84 = por %p82, %p83
    %p86 = scmp.ne.s32.totalorder %s71, %s85
    %p87 = scmp.eq.s32.totalorder %s19, 0
    %p88 = por %p86, %p87
    %s90 = sadd.s32 %s89, 1
    %p93 = scmp.eq.s32.totalorder %s13, 1
    %p94 = scmp.ne.s32.totalorder %s89, %s91
    %p95 = scmp.eq.s32.totalorder %s13, 0
    %p96 = por %p94, %p95
    %p97 = scmp.ne.s32.totalorder %s89, %s91
    %p98 = scmp.eq.s32.totalorder %s18, 1
    %p99 = por %p97, %p98
    %p100 = scmp.ne.s32.totalorder %s91, %s92
    %p101 = scmp.eq.s32.totalorder %s18, 0
    %p102 = por %p100, %p101
    %p103 = scmp.ne.s32.totalorder %s91, %s92
    %p104 = scmp.eq.s32.totalorder %s19, 1
    %p105 = por %p103, %p104
    %p107 = scmp.ne.s32.totalorder %s92, %s106
    %p108 = scmp.eq.s32.totalorder %s19, 0
    %p109 = por %p107, %p108
    %s111 = sadd.s32 %s110, 1
    %p114 = scmp.eq.s32.totalorder %s13, 1
    %p115 = scmp.ne.s32.totalorder %s110, %s112
    %p116 = scmp.eq.s32.totalorder %s13, 0
    %p117 = por %p115, %p116
    %p118 = scmp.ne.s32.totalorder %s110, %s112
    %p119 = scmp.eq.s32.totalorder %s18, 1
    %p120 = por %p118, %p119
    %p121 = scmp.ne.s32.totalorder %s112, %s113
    %p122 = scmp.eq.s32.totalorder %s18, 0
    %p123 = por %p121, %p122
    %p124 = scmp.ne.s32.totalorder %s112, %s113
    %p125 = scmp.eq.s32.totalorder %s19, 1
    %p126 = por %p124, %p125
    %p128 = scmp.ne.s32.totalorder %s113, %s127
    %p129 = scmp.eq.s32.totalorder %s19, 0
    %p130 = por %p128, %p129
    %s132 = sadd.s32 %s131, 1
    %p135 = scmp.eq.s32.totalorder %s13, 1
    %p136 = scmp.ne.s32.totalorder %s131, %s133
    %p137 = scmp.eq.s32.totalorder %s13, 0
    %p138 = por %p136, %p137
    %p139 = scmp.ne.s32.totalorder %s131, %s133
    %p140 = scmp.eq.s32.totalorder %s18, 1
    %p141 = por %p139, %p140
    %p142 = scmp.ne.s32.totalorder %s133, %s134
    %p143 = scmp.eq.s32.totalorder %s18, 0
    %p144 = por %p142, %p143
    %p145 = scmp.ne.s32.totalorder %s133, %s134
    %p146 = scmp.eq.s32.totalorder %s19, 1
    %p147 = por %p145, %p146
    %p149 = scmp.ne.s32.totalorder %s134, %s148
    %p150 = scmp.eq.s32.totalorder %s19, 0
    %p151 = por %p149, %p150
    %s153 = sadd.s32 %s152, 1
    %p156 = scmp.eq.s32.totalorder %s13, 1
    %p157 = scmp.ne.s32.totalorder %s152, %s154
    %p158 = scmp.eq.s32.totalorder %s13, 0
    %p159 = por %p157, %p158
    %p160 = scmp.ne.s32.totalorder %s152, %s154
    %p161 = scmp.eq.s32.totalorder %s18, 1
    %p162 = por %p160, %p161
    %p163 = scmp.ne.s32.totalorder %s154, %s155
    %p164 = scmp.eq.s32.totalorder %s18, 0
    %p165 = por %p163, %p164
    %p166 = scmp.ne.s32.totalorder %s154, %s155
    %p167 = scmp.eq.s32.totalorder %s19, 1
    %p168 = por %p166, %p167
    %p170 = scmp.ne.s32.totalorder %s155, %s169
    %p171 = scmp.eq.s32.totalorder %s19, 0
    %p172 = por %p170, %p171
    %s173 = ssub.s32 %s13, %s20
    %p174 = scmp.eq.s32.totalorder %s173, 0
    %s176 = sadd.s32 %s175, 1
    %s177 = scalar_select %p174, %s175, %s176
    %p180 = pneg %p174
    %p181 = scmp.eq.s32.totalorder %s13, 1
    %p182 = por %p180, %p181
    %p183 = scmp.ne.s32.totalorder %s175, %s178
    %p184 = scmp.eq.s32.totalorder %s13, 0
    %p185 = por %p183, %p184
    %p186 = scmp.ne.s32.totalorder %s175, %s178
    %p187 = scmp.eq.s32.totalorder %s18, 1
    %p188 = por %p186, %p187
    %p189 = scmp.ne.s32.totalorder %s178, %s179
    %p190 = scmp.eq.s32.totalorder %s18, 0
    %p191 = por %p189, %p190
    %p192 = scmp.ne.s32.totalorder %s178, %s179
    %p193 = scmp.eq.s32.totalorder %s19, 1
    %p194 = por %p192, %p193
    %p196 = scmp.ne.s32.totalorder %s179, %s195
    %p197 = scmp.eq.s32.totalorder %s19, 0
    %p198 = por %p196, %p197
    %p199 = scmp.le.s32.totalorder 1, %s13
    %p200 = scmp.lt.s32.totalorder %s13, 3
    %p201 = pnand %p199, %p200
    %p202 = pneg %p201
    // Predicated region
    $region9: #{neural_network_forward.1} parent=5 // pred_check
      _
    $region10: #{neural_network_forward.1} parent=5 // pred_check_branch
      %204 = sbr.rel (%p201) target = $region12
    $region11: #{neural_network_forward.1} parent=5 // pred_region
      %s205 = ssub.s32 %s13, 1
      // Predicated region
      $region13: #{neural_network_forward.1} parent=11 // pred_check
        %p206 = pneg %p60
      $region14: #{neural_network_forward.1} parent=11 // pred_check_branch
        %208 = sbr.rel (%p206) target = $region16
      $region15: #{neural_network_forward.1} parent=11 // pred_region
        _
      $region16: #{neural_network_forward.1} parent=11 // pred_fallthru
        _
      // Predicated region
      $region17: #{neural_network_forward.1} parent=11 // pred_check
        %p209 = pneg %p81
      $region18: #{neural_network_forward.1} parent=11 // pred_check_branch
        %211 = sbr.rel (%p209) target = $region20
      $region19: #{neural_network_forward.1} parent=11 // pred_region
        _
      $region20: #{neural_network_forward.1} parent=11 // pred_fallthru
        _
      // Predicated region
      $region21: #{neural_network_forward.1} parent=11 // pred_check
        %p212 = pneg %p102
      $region22: #{neural_network_forward.1} parent=11 // pred_check_branch
        %214 = sbr.rel (%p212) target = $region24
      $region23: #{neural_network_forward.1} parent=11 // pred_region
        _
      $region24: #{neural_network_forward.1} parent=11 // pred_fallthru
        _
      // Predicated region
      $region25: #{neural_network_forward.1} parent=11 // pred_check
        %p215 = pneg %p123
      $region26: #{neural_network_forward.1} parent=11 // pred_check_branch
        %217 = sbr.rel (%p215) target = $region28
      $region27: #{neural_network_forward.1} parent=11 // pred_region
        _
      $region28: #{neural_network_forward.1} parent=11 // pred_fallthru
        _
      // Predicated region
      $region29: #{neural_network_forward.1} parent=11 // pred_check
        %p218 = pneg %p144
      $region30: #{neural_network_forward.1} parent=11 // pred_check_branch
        %220 = sbr.rel (%p218) target = $region32
      $region31: #{neural_network_forward.1} parent=11 // pred_region
        _
      $region32: #{neural_network_forward.1} parent=11 // pred_fallthru
        _
      // Predicated region
      $region33: #{neural_network_forward.1} parent=11 // pred_check
        %p221 = pneg %p165
      $region34: #{neural_network_forward.1} parent=11 // pred_check_branch
        %223 = sbr.rel (%p221) target = $region36
      $region35: #{neural_network_forward.1} parent=11 // pred_region
        _
      $region36: #{neural_network_forward.1} parent=11 // pred_fallthru
        _
    $region12: #{neural_network_forward.1} parent=5 // pred_fallthru
      _
    %p224 = scmp.lt.s32.totalorder %s13, 2
    // Predicated region
    $region37: #{neural_network_forward.1} parent=5 // pred_check
      %p225 = pneg %p224
    $region38: #{neural_network_forward.1} parent=5 // pred_check_branch
      %227 = sbr.rel (%p225) target = $region40
    $region39: #{neural_network_forward.1} parent=5 // pred_region
      // Predicated region
      $region41: #{neural_network_forward.1} parent=39 // pred_check
        %p228 = pneg %p33
      $region42: #{neural_network_forward.1} parent=39 // pred_check_branch
        %230 = sbr.rel (%p228) target = $region44
      $region43: #{neural_network_forward.1} parent=39 // pred_region
        %s231 = smul.u32 4, %s13
        %p232 = scmp.lt.s32.totalorder %s231, 7
        %s233 = scalar_select %p232, %s231, 7
        %s234 = smul.addr %s233, 8
        %s235 = scalar_lea.vmem %s0, %s234
        %s236 = smul.u32 4, %s13
      $region44: #{neural_network_forward.1} parent=39 // pred_fallthru
        _
    $region40: #{neural_network_forward.1} parent=5 // pred_fallthru
      _
    %p237 = scmp.le.s32.totalorder 1, %s13
    %p238 = scmp.lt.s32.totalorder %s13, 3
    %p239 = pnand %p237, %p238
    %p240 = pneg %p239
    // Predicated region
    $region45: #{neural_network_forward.1} parent=5 // pred_check
      _
    $region46: #{neural_network_forward.1} parent=5 // pred_check_branch
      %242 = sbr.rel (%p239) target = $region48
    $region47: #{neural_network_forward.1} parent=5 // pred_region
      %s243 = ssub.s32 %s13, 1
      %s244 = smul.u32 4, %s18
      %p245 = scmp.lt.s32.totalorder %s244, 7
      %s246 = scalar_select %p245, %s244, 7
      %s247 = smul.addr %s246, 8
      %s248 = scalar_lea.vmem %s0, %s247
      %p249 = pneg %p39
      %p250 = pneg %p36
      %p251 = pneg %p60
      %p252 = pneg %p57
      %p253 = pneg %p81
      %p254 = pneg %p78
      %p255 = pneg %p102
      %p256 = pneg %p99
      %p257 = pneg %p123
      %p258 = pneg %p120
      %p259 = pneg %p144
      %p260 = pneg %p141
      %p261 = pneg %p165
      %p262 = pneg %p162
      %p263 = pneg %p191
      %p264 = pneg %p188
      %s265 = smul.u32 4, %s18
      %p266 = scmp.lt.s32.totalorder %s265, 7
      %s267 = scalar_select %p266, %s265, 7
      %s268 = smul.addr %s267, 8
      %s269 = scalar_lea.vmem %s7, %s268
      %s270 = smul.u32 4, %s18
      %p271 = scmp.lt.s32.totalorder %s270, 7
      %s272 = scalar_select %p271, %s270, 7
      %s273 = smul.addr %s272, 8
      %s274 = scalar_lea.vmem %s0, %s273
      %s275 = smul.u32 4, %s18
      %s276 = smul.u32 4, %s18
      %p277 = scmp.lt.s32.totalorder %s276, 7
      %s278 = scalar_select %p277, %s276, 7
      %s279 = smul.addr %s278, 8
      %s280 = scalar_lea.vmem %s7, %s279
      %s281 = smul.u32 4, %s18
      %v283 = vld [vmem:[%s274] sm:$0xff]
      %v284 = vld [vmem:[%s274 + $0x8] sm:$0xff]
      %v285 = vld [vmem:[%s274 + $0x10] sm:$0xff]
      %v286 = vld [vmem:[%s274 + $0x18] sm:$0xff]
      %v287 = vpack.c.bf16 %v284, %v283
      %v288 = vpack.c.bf16 %v286, %v285
      %v289 = vld [vmem:[%s1] sm:$0xf]
      %v290 = vld [vmem:[%s1 + $0x4] sm:$0xf]
      %v291 = vld [vmem:[%s1 + $0x8] sm:$0xf]
      %v292 = vld [vmem:[%s1 + $0xc] sm:$0xf]
      %v293 = vld [vmem:[%s1 + $0x10] sm:$0xf]
      %v294 = vld [vmem:[%s1 + $0x14] sm:$0xf]
      %v295 = vld [vmem:[%s1 + $0x18] sm:$0xf]
      %v296 = vld [vmem:[%s1 + $0x1c] sm:$0xf]
      %v297 = vld [vmem:[%s2] sm:$0x1]
      %v299 = vlaneseq
      %v300 = vshrl.u32 %v299, 7
      %v301 = vsub.s32 0, %v300
      %v302 = vrot.slane %v297, %v301
      %v312 = vunpack.c.l.b16 %v289
      %v313 = vunpack.c.l.b16 %v290
      %v314 = vunpack.c.l.b16 %v291
      %v315 = vunpack.c.l.b16 %v292
      %v316 = vunpack.c.l.b16 %v293
      %v317 = vunpack.c.l.b16 %v294
      %v318 = vunpack.c.l.b16 %v295
      %v319 = vunpack.c.l.b16 %v296
      %v320 = vpack.c.b16 %v313, %v312
      %v321 = vpack.c.b16 %v315, %v314
      %v322 = vpack.c.b16 %v317, %v316
      %v323 = vpack.c.b16 %v319, %v318
      %vm328 = vcmask 523264
      %v330 = vsel %vm328, %v287, 0
      %v333 = vsel %vm328, %v288, 0
      %335 = vmatprep.subr.bf16.mxu0 0
      %336 = vmatpush1.bf16.msra.mxu0 0
      %337 = vmatprep.subr.bf16.mxu0 0
      %338 = vmatpush1.bf16.msra.mxu0 0
      %339 = vmatprep.subr.bf16.mxu0 0
      %340 = vmatpush1.bf16.msra.mxu0 0
      %341 = vmatprep.subr.bf16.mxu0 0
      %342 = vmatpush1.bf16.msra.mxu0 0
      %343 = vmatprep.subr.bf16.mxu0 0
      %344 = vmatpush1.bf16.msra.mxu0 %v323
      %345 = vmatprep.subr.bf16.mxu0 0
      %346 = vmatpush1.bf16.msra.mxu0 %v322
      %347 = vmatprep.subr.bf16.mxu0 0
      %348 = vmatpush1.bf16.msra.mxu0 %v321
      %349 = vmatprep.subr.bf16.mxu0 0
      %350 = vmatpush1.bf16.msra.mxu0 %v320
      %351 = vmatprep.subr.bf16.mxu0 0
      %352 = vmatpush2.bf16.msra.mxu0 0
      %353 = vmatprep.subr.bf16.mxu0 0
      %354 = vmatpush2.bf16.msra.mxu0 0
      %355 = vmatprep.subr.bf16.mxu0 0
      %356 = vmatpush2.bf16.msra.mxu0 0
      %357 = vmatprep.subr.bf16.mxu0 0
      %358 = vmatpush2.bf16.msra.mxu0 0
      %359 = vmatprep.subr.bf16.mxu0 0
      %360 = vmatpush2.bf16.msra.mxu0 0
      %361 = vmatprep.subr.bf16.mxu0 0
      %362 = vmatpush2.bf16.msra.mxu0 0
      %363 = vmatprep.subr.bf16.mxu0 0
      %364 = vmatpush2.bf16.msra.mxu0 0
      %365 = vmatprep.subr.bf16.mxu0 0
      %366 = vmatpush2.bf16.msra.mxu0 0
      %367 = vmatprep.mubr.bf16.mxu0 0
      %368 = vmatmul.mubr.bf16.gmra.mxu0 %v330
      %v369 = vpop.f32.mrf.mxu0
      %v370 = vadd.f32 %v302, %v369
      %v371 = vpop.f32.mrf.mxu0
      %v372 = vpop.f32.mrf.mxu0
      %v373 = vadd.f32 %v302, %v372
      %v374 = vpop.f32.mrf.mxu0
      %375 = vmatprep.mubr.bf16.mxu0 0
      %376 = vmatmul.mubr.bf16.gmra.mxu0 %v333
      %v377 = vpop.f32.mrf.mxu0
      %v378 = vadd.f32 %v302, %v377
      %v379 = vpop.f32.mrf.mxu0
      %v380 = vpop.f32.mrf.mxu0
      %v381 = vadd.f32 %v302, %v380
      %v382 = vpop.f32.mrf.mxu0
      %383 = vdwg.mxu0
      %v384 = vmax.f32 %v370, 0.0
      %v385 = vmax.f32 %v373, 0.0
      %v386 = vmax.f32 %v378, 0.0
      %v387 = vmax.f32 %v381, 0.0
      %v388 = vpack.c.bf16 %v385, %v384
      %v389 = vpack.c.bf16 %v387, %v386
      %v390 = vld [vmem:[%s3] sm:$0xf]
      %v391 = vld [vmem:[%s3 + $0x4] sm:$0xf]
      %v392 = vld [vmem:[%s3 + $0x8] sm:$0xf]
      %v393 = vld [vmem:[%s3 + $0xc] sm:$0xf]
      %v394 = vld [vmem:[%s4] sm:$0x1]
      %v396 = vlaneseq
      %v397 = vshrl.u32 %v396, 7
      %v398 = vsub.s32 0, %v397
      %v399 = vrot.slane %v394, %v398
      %v405 = vunpack.c.l.b16 %v390
      %v406 = vunpack.c.l.b16 %v391
      %v407 = vunpack.c.l.b16 %v392
      %v408 = vunpack.c.l.b16 %v393
      %v409 = vpack.c.b16 %v406, %v405
      %v410 = vpack.c.b16 %v408, %v407
      %vm413 = vcmask 261120
      %v415 = vsel %vm413, %v388, 0
      %v418 = vsel %vm413, %v389, 0
      %420 = vmatprep.subr.bf16.mxu0 0
      %421 = vmatpush1.bf16.msra.mxu0 0
      %422 = vmatprep.subr.bf16.mxu0 0
      %423 = vmatpush1.bf16.msra.mxu0 0
      %424 = vmatprep.subr.bf16.mxu0 0
      %425 = vmatpush1.bf16.msra.mxu0 0
      %426 = vmatprep.subr.bf16.mxu0 0
      %427 = vmatpush1.bf16.msra.mxu0 0
      %428 = vmatprep.subr.bf16.mxu0 0
      %429 = vmatpush1.bf16.msra.mxu0 0
      %430 = vmatprep.subr.bf16.mxu0 0
      %431 = vmatpush1.bf16.msra.mxu0 0
      %432 = vmatprep.subr.bf16.mxu0 0
      %433 = vmatpush1.bf16.msra.mxu0 %v410
      %434 = vmatprep.subr.bf16.mxu0 0
      %435 = vmatpush1.bf16.msra.mxu0 %v409
      %436 = vmatprep.subr.bf16.mxu0 0
      %437 = vmatpush2.bf16.msra.mxu0 0
      %438 = vmatprep.subr.bf16.mxu0 0
      %439 = vmatpush2.bf16.msra.mxu0 0
      %440 = vmatprep.subr.bf16.mxu0 0
      %441 = vmatpush2.bf16.msra.mxu0 0
      %442 = vmatprep.subr.bf16.mxu0 0
      %443 = vmatpush2.bf16.msra.mxu0 0
      %444 = vmatprep.subr.bf16.mxu0 0
      %445 = vmatpush2.bf16.msra.mxu0 0
      %446 = vmatprep.subr.bf16.mxu0 0
      %447 = vmatpush2.bf16.msra.mxu0 0
      %448 = vmatprep.subr.bf16.mxu0 0
      %449 = vmatpush2.bf16.msra.mxu0 0
      %450 = vmatprep.subr.bf16.mxu0 0
      %451 = vmatpush2.bf16.msra.mxu0 0
      %452 = vmatprep.mubr.bf16.mxu0 0
      %453 = vmatmul.mubr.bf16.gmra.mxu0 %v415
      %v454 = vpop.f32.mrf.mxu0
      %v455 = vadd.f32 %v399, %v454
      %v456 = vpop.f32.mrf.mxu0
      %v457 = vpop.f32.mrf.mxu0
      %v458 = vadd.f32 %v399, %v457
      %v459 = vpop.f32.mrf.mxu0
      %460 = vmatprep.mubr.bf16.mxu0 0
      %461 = vmatmul.mubr.bf16.gmra.mxu0 %v418
      %v462 = vpop.f32.mrf.mxu0
      %v463 = vadd.f32 %v399, %v462
      %v464 = vpop.f32.mrf.mxu0
      %v465 = vpop.f32.mrf.mxu0
      %v466 = vadd.f32 %v399, %v465
      %v467 = vpop.f32.mrf.mxu0
      %468 = vdwg.mxu0
      %v469 = vmax.f32 %v455, 0.0
      %v470 = vmax.f32 %v458, 0.0
      %v471 = vmax.f32 %v463, 0.0
      %v472 = vmax.f32 %v466, 0.0
      %v473 = vpack.c.bf16 %v470, %v469
      %v474 = vpack.c.bf16 %v472, %v471
      %v475 = vld [vmem:[%s5] sm:$0xf]
      %v476 = vld [vmem:[%s5 + $0x4] sm:$0xf]
      %v477 = vld [vmem:[%s5 + $0x8] sm:$0xf]
      %v478 = vld [vmem:[%s5 + $0xc] sm:$0xf]
      %v479 = vld [vmem:[%s6] sm:$0x1]
      %v481 = vlaneseq
      %v482 = vshrl.u32 %v481, 7
      %v483 = vsub.s32 0, %v482
      %v484 = vrot.slane %v479, %v483
      %v490 = vunpack.c.l.b16 %v475
      %v491 = vunpack.c.l.b16 %v476
      %v492 = vunpack.c.l.b16 %v477
      %v493 = vunpack.c.l.b16 %v478
      %v494 = vpack.c.b16 %v491, %v490
      %v495 = vpack.c.b16 %v493, %v492
      %v499 = vsel %vm413, %v473, 0
      %v502 = vsel %vm413, %v474, 0
      %504 = vmatprep.subr.bf16.mxu0 0
      %505 = vmatpush1.bf16.msra.mxu0 0
      %506 = vmatprep.subr.bf16.mxu0 0
      %507 = vmatpush1.bf16.msra.mxu0 0
      %508 = vmatprep.subr.bf16.mxu0 0
      %509 = vmatpush1.bf16.msra.mxu0 0
      %510 = vmatprep.subr.bf16.mxu0 0
      %511 = vmatpush1.bf16.msra.mxu0 0
      %512 = vmatprep.subr.bf16.mxu0 0
      %513 = vmatpush1.bf16.msra.mxu0 0
      %514 = vmatprep.subr.bf16.mxu0 0
      %515 = vmatpush1.bf16.msra.mxu0 0
      %516 = vmatprep.subr.bf16.mxu0 0
      %517 = vmatpush1.bf16.msra.mxu0 %v495
      %518 = vmatprep.subr.bf16.mxu0 0
      %519 = vmatpush1.bf16.msra.mxu0 %v494
      %520 = vmatprep.subr.bf16.mxu0 0
      %521 = vmatpush2.bf16.msra.mxu0 0
      %522 = vmatprep.subr.bf16.mxu0 0
      %523 = vmatpush2.bf16.msra.mxu0 0
      %524 = vmatprep.subr.bf16.mxu0 0
      %525 = vmatpush2.bf16.msra.mxu0 0
      %526 = vmatprep.subr.bf16.mxu0 0
      %527 = vmatpush2.bf16.msra.mxu0 0
      %528 = vmatprep.subr.bf16.mxu0 0
      %529 = vmatpush2.bf16.msra.mxu0 0
      %530 = vmatprep.subr.bf16.mxu0 0
      %531 = vmatpush2.bf16.msra.mxu0 0
      %532 = vmatprep.subr.bf16.mxu0 0
      %533 = vmatpush2.bf16.msra.mxu0 0
      %534 = vmatprep.subr.bf16.mxu0 0
      %535 = vmatpush2.bf16.msra.mxu0 0
      %536 = vmatprep.mubr.bf16.mxu0 0
      %537 = vmatmul.mubr.bf16.gmra.mxu0 %v499
      %v538 = vpop.f32.mrf.mxu0
      %v539 = vadd.f32 %v484, %v538
      %v540 = vpop.f32.mrf.mxu0
      %v541 = vpop.f32.mrf.mxu0
      %v542 = vadd.f32 %v484, %v541
      %v543 = vpop.f32.mrf.mxu0
      %544 = vmatprep.mubr.bf16.mxu0 0
      %545 = vmatmul.mubr.bf16.gmra.mxu0 %v502
      %v546 = vpop.f32.mrf.mxu0
      %v547 = vadd.f32 %v484, %v546
      %v548 = vpop.f32.mrf.mxu0
      %v549 = vpop.f32.mrf.mxu0
      %v550 = vadd.f32 %v484, %v549
      %v551 = vpop.f32.mrf.mxu0
      %552 = vdwg.mxu0
      %553 = vst [vmem:[%s280] sm:$0xff] %v539
      %554 = vst [vmem:[%s280 + $0x8] sm:$0xff] %v542
      %555 = vst [vmem:[%s280 + $0x10] sm:$0xff] %v547
      %556 = vst [vmem:[%s280 + $0x18] sm:$0xff] %v550
      %s557 = smul.u32 4, %s18
      %p558 = scmp.lt.s32.totalorder %s557, 7
      %s559 = scalar_select %p558, %s557, 7
      %s560 = smul.addr %s559, 8
      %s561 = scalar_lea.vmem %s7, %s560
      // Predicated region
      $region49: #{neural_network_forward.1} parent=47 // pred_check
        %p562 = pneg %p188
      $region50: #{neural_network_forward.1} parent=47 // pred_check_branch
        %564 = sbr.rel (%p562) target = $region52
      $region51: #{neural_network_forward.1} parent=47 // pred_region
        %s565 = smul.u32 4, %s18
      $region52: #{neural_network_forward.1} parent=47 // pred_fallthru
        _
    $region48: #{neural_network_forward.1} parent=5 // pred_fallthru
      _
    %p566 = scmp.le.s32.totalorder 2, %s13
    // Predicated region
    $region53: #{neural_network_forward.1} parent=5 // pred_check
      %p567 = pneg %p566
    $region54: #{neural_network_forward.1} parent=5 // pred_check_branch
      %569 = sbr.rel (%p567) target = $region56
    $region55: #{neural_network_forward.1} parent=5 // pred_region
      %s570 = ssub.s32 %s13, 2
      // Predicated region
      $region57: #{neural_network_forward.1} parent=55 // pred_check
        %p571 = pneg %p194
      $region58: #{neural_network_forward.1} parent=55 // pred_check_branch
        %573 = sbr.rel (%p571) target = $region60
      $region59: #{neural_network_forward.1} parent=55 // pred_region
        %s574 = smul.u32 4, %s19
        %p575 = scmp.lt.s32.totalorder %s574, 7
        %s576 = scalar_select %p575, %s574, 7
        %s577 = smul.addr %s576, 8
        %s578 = scalar_lea.vmem %s7, %s577
      $region60: #{neural_network_forward.1} parent=55 // pred_fallthru
        _
    $region56: #{neural_network_forward.1} parent=5 // pred_fallthru
      _
  $region6: #{neural_network_forward.1} parent=0 // loop_footer
    %s17 = sadd.s32 1, %s13
  $region7: #{neural_network_forward.1} parent=0 // loop_footer_branch
    %12 = sbr.rel target = $region3
  $region8: #{neural_network_forward.1} parent=0 // loop_exit
    _

</llo_original>
